<compile_context>
chip_gen: v5e
topology: v5e:2x2
jax: 0.10.0
libtpu: 0.0.40
codegen_flags: <defaults>
</compile_context>

<pallas_src>
import jax
import jax.numpy as jnp
import numpy as np
from jax.experimental import pallas as pl
from jax.experimental.pallas import tpu as pltpu

# ---- sizes implied by SoniaNet ----
IMG = 32               # input spatial size (forced by the 10*5*5 flatten)
C1, C2 = 6, 10         # conv1 / conv2 output channels
K = 5                  # conv kernel size
H1 = IMG - K + 1       # 28  (conv1 output)
P1 = H1 // 2           # 14  (pool1 output)
H2 = P1 - K + 1        # 10  (conv2 output)
P2 = H2 // 2           # 5   (pool2 output)
FEAT = C2 * P2 * P2    # 250 (sonia input features)
MAX_NODES = 10         # sonia output features
N_OUT = 10             # fc2 output features
HIDDEN_INIT = 10


# ---------------- static (numpy) constants built once at import time ----------------
def _shift_basis(n_in, n_out, k):
    # SHIFT[dj][j+dj, j] = 1  -> used to "lower" conv kernels into banded matrices
    return np.stack([np.eye(n_in, n_out, k=-dj, dtype=np.float32) for dj in range(k)])


_SHIFT1 = _shift_basis(IMG, H1, K)     # (5, 32, 28)
_SHIFT2 = _shift_basis(P1, H2, K)      # (5, 14, 10)


def _pool1_row_selector():
    # picks conv1 output rows 0,2,...,26 out of the 27 adjacent-row maxima
    s = np.zeros((P1, H1 - 1), np.float32)
    s[np.arange(P1), 2 * np.arange(P1)] = 1.0
    return s                           # (14, 27)


def _pool1_col_selector():
    # picks lanes c*28 + 2q out of the 167 adjacent-lane maxima -> lane c*14 + q
    s = np.zeros((C1 * H1 - 1, C1 * P1), np.float32)
    for c in range(C1):
        for q in range(P1):
            s[c * H1 + 2 * q, c * P1 + q] = 1.0
    return s                           # (167, 84)


def _pool2_mask():
    # 1 at [2u, o*10 + 2v]: the 250 pool2 outputs inside the (9, 99) 2x2-max array
    m = np.zeros((H2 - 1, C2 * H2 - 1), np.float32)
    for o in range(C2):
        for u in range(P2):
            for v in range(P2):
                m[2 * u, o * H2 + 2 * v] = 1.0
    return m                           # (9, 99)


_SROW1 = _pool1_row_selector()
_SCOL1 = _pool1_col_selector()
_MASK2 = _pool2_mask()


# ---------------------------------- kernel ----------------------------------
def _bf16_dot(a, b):
    # bf16 operands (MXU-native on v5e/v6e/v7x), f32 accumulation.
    return jax.lax.dot(a.astype(jnp.bfloat16), b.astype(jnp.bfloat16),
                       preferred_element_type=jnp.float32)


def sonianet_kernel(x_ref, wb1_ref, b1e_ref, srow1_ref, scol1_ref,
                    wb2_ref, b2e_ref, mask2_ref, tail_ref, out_ref):
    x = x_ref[...]                                            # (32, 32) f32

    # ---- conv1 (+bias, tanh): 5 banded dots, one per kernel row di ----
    # acc1[i, c*28+j] = sum_{di,dj} x[i+di, j+dj] * w1[c, 0, di, dj]
    acc1 = _bf16_dot(x[0:H1, :], wb1_ref[0])                  # (28, 32) @ (32, 168)
    for di in range(1, K):
        acc1 = acc1 + _bf16_dot(x[di:di + H1, :], wb1_ref[di])
    a1 = jnp.tanh(acc1 + b1e_ref[...])                        # (28, 168)  [i, c*28+j]

    # ---- pool1: 2x2/2 max -> (14, 84)  [p, c*14+q] ----
    rmax = jnp.maximum(a1[0:H1 - 1, :], a1[1:H1, :])          # adjacent rows (27, 168)
    rsel = _bf16_dot(srow1_ref[...], rmax)                    # even rows     (14, 168)
    cmax = jnp.maximum(rsel[:, 0:C1 * H1 - 1], rsel[:, 1:C1 * H1])   # adj cols (14, 167)
    p1 = _bf16_dot(cmax, scol1_ref[...])                      # even cols     (14, 84)

    # ---- conv2 (+bias, tanh): 5 banded dots ----
    # acc2[r, o*10+s] = sum_{c,di,dj} pooled1[c, r+di, s+dj] * w2[o, c, di, dj]
    acc2 = _bf16_dot(p1[0:H2, :], wb2_ref[0])                 # (10, 84) @ (84, 100)
    for di in range(1, K):
        acc2 = acc2 + _bf16_dot(p1[di:di + H2, :], wb2_ref[di])
    a2 = jnp.tanh(acc2 + b2e_ref[...])                        # (10, 100)  [r, o*10+s]

    # ---- pool2 + global feature sum (all 250 pooled values, one reduction) ----
    rmax2 = jnp.maximum(a2[0:H2 - 1, :], a2[1:H2, :])         # (9, 100)
    cmax2 = jnp.maximum(rmax2[:, 0:C2 * H2 - 1], rmax2[:, 1:C2 * H2])   # (9, 99)
    total = jnp.sum(cmax2 * mask2_ref[...])                   # scalar f32

    # ---- sonia + fc2 tail, affine in `total` ----
    # (`A: pow(2)` / `B: tanh()` in SoniaFunc.forward are no-op annotations.)
    tail = tail_ref[...]                                      # (2, 10): [const; csum]
    out_ref[...] = tail[0:1, :] - total * tail[1:2, :]        # (1, 10)


# ---------------------------------- wrapper ----------------------------------
@jax.jit
def sonianet_forward(x, params):
    """Pallas forward of SoniaNet.  x: (1, 1, 32, 32) float32 (NCHW, N=C=1)."""
    w1, b1, w2, b2, ws, wfc, bfc = params
    assert x.shape == (1, 1, IMG, IMG)
    f32, bf16 = jnp.float32, jnp.bfloat16

    x2 = x[0, 0].astype(f32)                                  # (32, 32)

    # banded ("lowered") conv weights:
    #   wb1[di, r, c*28+j] = w1[c, 0, di, r-j]   (0 elsewhere)
    w1p = w1[:, 0, :, :].astype(f32)                          # (6, 5, 5)  [c, di, dj]
    wb1 = jnp.einsum('cde,erj->drcj', w1p, _SHIFT1).reshape(K, IMG, C1 * H1).astype(bf16)
    #   wb2[di, c*14+q, o*10+s] = w2[o, c, di, q-s]  (0 elsewhere)
    wb2 = jnp.einsum('ocde,eqs->dcqos', w2.astype(f32), _SHIFT2).reshape(
        K, C1 * P1, C2 * H2).astype(bf16)

    b1e = jnp.repeat(b1.astype(f32), H1)[None, :]             # (1, 168)
    b2e = jnp.repeat(b2.astype(f32), H2)[None, :]             # (1, 100)

    srow1 = jnp.asarray(_SROW1, bf16)                         # (14, 27)
    scol1 = jnp.asarray(_SCOL1, bf16)                         # (167, 84)
    mask2 = jnp.asarray(_MASK2, f32)                          # (9, 99)

    # sonia + fc2 tail is affine in total = sum(flattened pool2 features):
    #   out = (sum(ws, 1) - total) @ wfc.T + bfc = const - total * csum
    const = jnp.sum(ws.astype(f32), axis=1)[None, :] @ wfc.T.astype(f32) + bfc[None, :]
    csum = jnp.sum(wfc.astype(f32), axis=1)[None, :]          # (1, 10)
    tail = jnp.concatenate([const, csum], axis=0)             # (2, 10)

    vmem = pl.BlockSpec(memory_space=pltpu.MemorySpace.VMEM)
    return pl.pallas_call(
        sonianet_kernel,
        out_shape=jax.ShapeDtypeStruct((1, N_OUT), f32),
        in_specs=[vmem] * 9,
        out_specs=vmem,
    )(x2, wb1, b1e, srow1, scol1, wb2, b2e, mask2, tail)


# ---------------------------------- reference ----------------------------------
def sonianet_reference(x, params):
    """Pure-JAX reference mirroring the PyTorch forward."""
    w1, b1, w2, b2, ws, wfc, bfc = params
    dn = ('NCHW', 'OIHW', 'NCHW')
    y = jax.lax.conv_general_dilated(x, w1, (1, 1), 'VALID', dimension_numbers=dn,
                                     precision=jax.lax.Precision.HIGHEST)
    y = jnp.tanh(y + b1[None, :, None, None])
    y = jax.lax.reduce_window(y, -jnp.inf, jax.lax.max, (1, 1, 2, 2), (1, 1, 2, 2), 'VALID')
    y = jax.lax.conv_general_dilated(y, w2, (1, 1), 'VALID', dimension_numbers=dn,
                                     precision=jax.lax.Precision.HIGHEST)
    y = jnp.tanh(y + b2[None, :, None, None])
    y = jax.lax.reduce_window(y, -jnp.inf, jax.lax.max, (1, 1, 2, 2), (1, 1, 2, 2), 'VALID')
    feat = y.reshape(-1, FEAT)                              # (1, 250), like x.view(-1, 250)
    A = ws - jnp.concatenate([feat] * MAX_NODES, axis=0)    # torch.cat([input]*10, 0)
    B = jnp.sum(A, axis=1)[None, :]                         # (1, 10)  (pow/tanh are no-ops)
    return B @ wfc.T + bfc[None, :]                         # fc2


if __name__ == "__main__":
    key = jax.random.PRNGKey(0)
    ks = jax.random.split(key, 8)
    # deterministic synthetic parameters (shapes from SoniaNet.__init__)
    w1 = jax.random.uniform(ks[0], (C1, 1, K, K), jnp.float32, -0.2, 0.2)
    b1 = jax.random.uniform(ks[1], (C1,), jnp.float32, -0.2, 0.2)
    w2 = jax.random.uniform(ks[2], (C2, C1, K, K), jnp.float32, -0.08, 0.08)
    b2 = jax.random.uniform(ks[3], (C2,), jnp.float32, -0.08, 0.08)
    ws = jax.random.uniform(ks[4], (MAX_NODES, FEAT), jnp.float32, -0.1, 0.1)
    ws = ws.at[HIDDEN_INIT:, :].set(0.0)   # SoniaLayer masks rows >= hidden_init (no-op here)
    wfc = jax.random.uniform(ks[5], (N_OUT, MAX_NODES), jnp.float32, -0.3, 0.3)
    bfc = jax.random.uniform(ks[6], (N_OUT,), jnp.float32, -0.3, 0.3)
    x = jax.random.normal(ks[7], (1, 1, IMG, IMG), jnp.float32)

    params = (w1, b1, w2, b2, ws, wfc, bfc)

    y = sonianet_forward(x, params)
    y = jax.block_until_ready(y)

    y_ref = sonianet_reference(x, params)
    np.testing.assert_allclose(np.asarray(y), np.asarray(y_ref), rtol=3e-2, atol=3e-2)
    print("KERNEL_OK")
</pallas_src>

<mosaic_0001>
module attributes {stable_mosaic.version = 11 : i64} {
  func.func @sonianet_kernel(%arg0: memref<32x32xf32, #tpu.memory_space<vmem>>, %arg1: memref<5x32x168xbf16, #tpu.memory_space<vmem>>, %arg2: memref<1x168xf32, #tpu.memory_space<vmem>>, %arg3: memref<14x27xbf16, #tpu.memory_space<vmem>>, %arg4: memref<167x84xbf16, #tpu.memory_space<vmem>>, %arg5: memref<5x84x100xbf16, #tpu.memory_space<vmem>>, %arg6: memref<1x100xf32, #tpu.memory_space<vmem>>, %arg7: memref<9x99xf32, #tpu.memory_space<vmem>>, %arg8: memref<2x10xf32, #tpu.memory_space<vmem>>, %arg9: memref<1x10xf32, #tpu.memory_space<vmem>>) attributes {dimension_semantics = [], scalar_prefetch = 0 : i64, scratch_operands = 0 : i64, tpu.core_type = #tpu.core_type<tc>} {
    %c0 = arith.constant 0 : index
    %c0_0 = arith.constant 0 : index
    %0 = vector.load %arg0[%c0, %c0_0] : memref<32x32xf32, #tpu.memory_space<vmem>>, vector<32x32xf32>
    %1 = vector.extract_strided_slice %0 {offsets = [0, 0], sizes = [28, 32], strides = [1, 1]} : vector<32x32xf32> to vector<28x32xf32>
    %c0_1 = arith.constant 0 : index
    %c0_2 = arith.constant 0 : index
    %c0_3 = arith.constant 0 : index
    %2 = vector.load %arg1[%c0_1, %c0_2, %c0_3] : memref<5x32x168xbf16, #tpu.memory_space<vmem>>, vector<1x32x168xbf16>
    %3 = vector.shape_cast %2 : vector<1x32x168xbf16> to vector<32x168xbf16>
    %4 = arith.truncf %1 : vector<28x32xf32> to vector<28x32xbf16>
    %cst = arith.constant dense<0.000000e+00> : vector<28x168xf32>
    %5 = tpu.matmul %4, %3, %cst {dimension_numbers = #tpu.dot_dimension_numbers<[1], [0], [0], [1], [0, 0, 1, 1], [], []>} : vector<28x32xbf16>, vector<32x168xbf16>, vector<28x168xf32> -> vector<28x168xf32>
    %6 = vector.extract_strided_slice %0 {offsets = [1, 0], sizes = [28, 32], strides = [1, 1]} : vector<32x32xf32> to vector<28x32xf32>
    %c1 = arith.constant 1 : index
    %c0_4 = arith.constant 0 : index
    %c0_5 = arith.constant 0 : index
    %7 = vector.load %arg1[%c1, %c0_4, %c0_5] : memref<5x32x168xbf16, #tpu.memory_space<vmem>>, vector<1x32x168xbf16>
    %8 = vector.shape_cast %7 : vector<1x32x168xbf16> to vector<32x168xbf16>
    %9 = arith.truncf %6 : vector<28x32xf32> to vector<28x32xbf16>
    %cst_6 = arith.constant dense<0.000000e+00> : vector<28x168xf32>
    %10 = tpu.matmul %9, %8, %cst_6 {dimension_numbers = #tpu.dot_dimension_numbers<[1], [0], [0], [1], [0, 0, 1, 1], [], []>} : vector<28x32xbf16>, vector<32x168xbf16>, vector<28x168xf32> -> vector<28x168xf32>
    %11 = arith.addf %5, %10 : vector<28x168xf32>
    %12 = vector.extract_strided_slice %0 {offsets = [2, 0], sizes = [28, 32], strides = [1, 1]} : vector<32x32xf32> to vector<28x32xf32>
    %c2 = arith.constant 2 : index
    %c0_7 = arith.constant 0 : index
    %c0_8 = arith.constant 0 : index
    %13 = vector.load %arg1[%c2, %c0_7, %c0_8] : memref<5x32x168xbf16, #tpu.memory_space<vmem>>, vector<1x32x168xbf16>
    %14 = vector.shape_cast %13 : vector<1x32x168xbf16> to vector<32x168xbf16>
    %15 = arith.truncf %12 : vector<28x32xf32> to vector<28x32xbf16>
    %cst_9 = arith.constant dense<0.000000e+00> : vector<28x168xf32>
    %16 = tpu.matmul %15, %14, %cst_9 {dimension_numbers = #tpu.dot_dimension_numbers<[1], [0], [0], [1], [0, 0, 1, 1], [], []>} : vector<28x32xbf16>, vector<32x168xbf16>, vector<28x168xf32> -> vector<28x168xf32>
    %17 = arith.addf %11, %16 : vector<28x168xf32>
    %18 = vector.extract_strided_slice %0 {offsets = [3, 0], sizes = [28, 32], strides = [1, 1]} : vector<32x32xf32> to vector<28x32xf32>
    %c3 = arith.constant 3 : index
    %c0_10 = arith.constant 0 : index
    %c0_11 = arith.constant 0 : index
    %19 = vector.load %arg1[%c3, %c0_10, %c0_11] : memref<5x32x168xbf16, #tpu.memory_space<vmem>>, vector<1x32x168xbf16>
    %20 = vector.shape_cast %19 : vector<1x32x168xbf16> to vector<32x168xbf16>
    %21 = arith.truncf %18 : vector<28x32xf32> to vector<28x32xbf16>
    %cst_12 = arith.constant dense<0.000000e+00> : vector<28x168xf32>
    %22 = tpu.matmul %21, %20, %cst_12 {dimension_numbers = #tpu.dot_dimension_numbers<[1], [0], [0], [1], [0, 0, 1, 1], [], []>} : vector<28x32xbf16>, vector<32x168xbf16>, vector<28x168xf32> -> vector<28x168xf32>
    %23 = arith.addf %17, %22 : vector<28x168xf32>
    %24 = vector.extract_strided_slice %0 {offsets = [4, 0], sizes = [28, 32], strides = [1, 1]} : vector<32x32xf32> to vector<28x32xf32>
    %c4 = arith.constant 4 : index
    %c0_13 = arith.constant 0 : index
    %c0_14 = arith.constant 0 : index
    %25 = vector.load %arg1[%c4, %c0_13, %c0_14] : memref<5x32x168xbf16, #tpu.memory_space<vmem>>, vector<1x32x168xbf16>
    %26 = vector.shape_cast %25 : vector<1x32x168xbf16> to vector<32x168xbf16>
    %27 = arith.truncf %24 : vector<28x32xf32> to vector<28x32xbf16>
    %cst_15 = arith.constant dense<0.000000e+00> : vector<28x168xf32>
    %28 = tpu.matmul %27, %26, %cst_15 {dimension_numbers = #tpu.dot_dimension_numbers<[1], [0], [0], [1], [0, 0, 1, 1], [], []>} : vector<28x32xbf16>, vector<32x168xbf16>, vector<28x168xf32> -> vector<28x168xf32>
    %29 = arith.addf %23, %28 : vector<28x168xf32>
    %c0_16 = arith.constant 0 : index
    %c0_17 = arith.constant 0 : index
    %30 = vector.load %arg2[%c0_16, %c0_17] : memref<1x168xf32, #tpu.memory_space<vmem>>, vector<1x168xf32>
    %31 = vector.broadcast %30 : vector<1x168xf32> to vector<28x168xf32>
    %32 = arith.addf %29, %31 : vector<28x168xf32>
    %33 = math.tanh %32 : vector<28x168xf32>
    %34 = vector.extract_strided_slice %33 {offsets = [0, 0], sizes = [27, 168], strides = [1, 1]} : vector<28x168xf32> to vector<27x168xf32>
    %35 = vector.extract_strided_slice %33 {offsets = [1, 0], sizes = [27, 168], strides = [1, 1]} : vector<28x168xf32> to vector<27x168xf32>
    %36 = arith.maximumf %34, %35 : vector<27x168xf32>
    %c0_18 = arith.constant 0 : index
    %c0_19 = arith.constant 0 : index
    %37 = vector.load %arg3[%c0_18, %c0_19] : memref<14x27xbf16, #tpu.memory_space<vmem>>, vector<14x27xbf16>
    %38 = arith.truncf %36 : vector<27x168xf32> to vector<27x168xbf16>
    %cst_20 = arith.constant dense<0.000000e+00> : vector<14x168xf32>
    %39 = tpu.matmul %37, %38, %cst_20 {dimension_numbers = #tpu.dot_dimension_numbers<[1], [0], [0], [1], [0, 0, 1, 1], [], []>} : vector<14x27xbf16>, vector<27x168xbf16>, vector<14x168xf32> -> vector<14x168xf32>
    %40 = vector.extract_strided_slice %39 {offsets = [0, 0], sizes = [14, 167], strides = [1, 1]} : vector<14x168xf32> to vector<14x167xf32>
    %41 = vector.extract_strided_slice %39 {offsets = [0, 1], sizes = [14, 167], strides = [1, 1]} : vector<14x168xf32> to vector<14x167xf32>
    %42 = arith.maximumf %40, %41 : vector<14x167xf32>
    %c0_21 = arith.constant 0 : index
    %c0_22 = arith.constant 0 : index
    %43 = vector.load %arg4[%c0_21, %c0_22] : memref<167x84xbf16, #tpu.memory_space<vmem>>, vector<167x84xbf16>
    %44 = arith.truncf %42 : vector<14x167xf32> to vector<14x167xbf16>
    %cst_23 = arith.constant dense<0.000000e+00> : vector<14x84xf32>
    %45 = tpu.matmul %44, %43, %cst_23 {dimension_numbers = #tpu.dot_dimension_numbers<[1], [0], [0], [1], [0, 0, 1, 1], [], []>} : vector<14x167xbf16>, vector<167x84xbf16>, vector<14x84xf32> -> vector<14x84xf32>
    %46 = vector.extract_strided_slice %45 {offsets = [0, 0], sizes = [10, 84], strides = [1, 1]} : vector<14x84xf32> to vector<10x84xf32>
    %c0_24 = arith.constant 0 : index
    %c0_25 = arith.constant 0 : index
    %c0_26 = arith.constant 0 : index
    %47 = vector.load %arg5[%c0_24, %c0_25, %c0_26] : memref<5x84x100xbf16, #tpu.memory_space<vmem>>, vector<1x84x100xbf16>
    %48 = vector.shape_cast %47 : vector<1x84x100xbf16> to vector<84x100xbf16>
    %49 = arith.truncf %46 : vector<10x84xf32> to vector<10x84xbf16>
    %cst_27 = arith.constant dense<0.000000e+00> : vector<10x100xf32>
    %50 = tpu.matmul %49, %48, %cst_27 {dimension_numbers = #tpu.dot_dimension_numbers<[1], [0], [0], [1], [0, 0, 1, 1], [], []>} : vector<10x84xbf16>, vector<84x100xbf16>, vector<10x100xf32> -> vector<10x100xf32>
    %51 = vector.extract_strided_slice %45 {offsets = [1, 0], sizes = [10, 84], strides = [1, 1]} : vector<14x84xf32> to vector<10x84xf32>
    %c1_28 = arith.constant 1 : index
    %c0_29 = arith.constant 0 : index
    %c0_30 = arith.constant 0 : index
    %52 = vector.load %arg5[%c1_28, %c0_29, %c0_30] : memref<5x84x100xbf16, #tpu.memory_space<vmem>>, vector<1x84x100xbf16>
    %53 = vector.shape_cast %52 : vector<1x84x100xbf16> to vector<84x100xbf16>
    %54 = arith.truncf %51 : vector<10x84xf32> to vector<10x84xbf16>
    %cst_31 = arith.constant dense<0.000000e+00> : vector<10x100xf32>
    %55 = tpu.matmul %54, %53, %cst_31 {dimension_numbers = #tpu.dot_dimension_numbers<[1], [0], [0], [1], [0, 0, 1, 1], [], []>} : vector<10x84xbf16>, vector<84x100xbf16>, vector<10x100xf32> -> vector<10x100xf32>
    %56 = arith.addf %50, %55 : vector<10x100xf32>
    %57 = vector.extract_strided_slice %45 {offsets = [2, 0], sizes = [10, 84], strides = [1, 1]} : vector<14x84xf32> to vector<10x84xf32>
    %c2_32 = arith.constant 2 : index
    %c0_33 = arith.constant 0 : index
    %c0_34 = arith.constant 0 : index
    %58 = vector.load %arg5[%c2_32, %c0_33, %c0_34] : memref<5x84x100xbf16, #tpu.memory_space<vmem>>, vector<1x84x100xbf16>
    %59 = vector.shape_cast %58 : vector<1x84x100xbf16> to vector<84x100xbf16>
    %60 = arith.truncf %57 : vector<10x84xf32> to vector<10x84xbf16>
    %cst_35 = arith.constant dense<0.000000e+00> : vector<10x100xf32>
    %61 = tpu.matmul %60, %59, %cst_35 {dimension_numbers = #tpu.dot_dimension_numbers<[1], [0], [0], [1], [0, 0, 1, 1], [], []>} : vector<10x84xbf16>, vector<84x100xbf16>, vector<10x100xf32> -> vector<10x100xf32>
    %62 = arith.addf %56, %61 : vector<10x100xf32>
    %63 = vector.extract_strided_slice %45 {offsets = [3, 0], sizes = [10, 84], strides = [1, 1]} : vector<14x84xf32> to vector<10x84xf32>
    %c3_36 = arith.constant 3 : index
    %c0_37 = arith.constant 0 : index
    %c0_38 = arith.constant 0 : index
    %64 = vector.load %arg5[%c3_36, %c0_37, %c0_38] : memref<5x84x100xbf16, #tpu.memory_space<vmem>>, vector<1x84x100xbf16>
    %65 = vector.shape_cast %64 : vector<1x84x100xbf16> to vector<84x100xbf16>
    %66 = arith.truncf %63 : vector<10x84xf32> to vector<10x84xbf16>
    %cst_39 = arith.constant dense<0.000000e+00> : vector<10x100xf32>
    %67 = tpu.matmul %66, %65, %cst_39 {dimension_numbers = #tpu.dot_dimension_numbers<[1], [0], [0], [1], [0, 0, 1, 1], [], []>} : vector<10x84xbf16>, vector<84x100xbf16>, vector<10x100xf32> -> vector<10x100xf32>
    %68 = arith.addf %62, %67 : vector<10x100xf32>
    %69 = vector.extract_strided_slice %45 {offsets = [4, 0], sizes = [10, 84], strides = [1, 1]} : vector<14x84xf32> to vector<10x84xf32>
    %c4_40 = arith.constant 4 : index
    %c0_41 = arith.constant 0 : index
    %c0_42 = arith.constant 0 : index
    %70 = vector.load %arg5[%c4_40, %c0_41, %c0_42] : memref<5x84x100xbf16, #tpu.memory_space<vmem>>, vector<1x84x100xbf16>
    %71 = vector.shape_cast %70 : vector<1x84x100xbf16> to vector<84x100xbf16>
    %72 = arith.truncf %69 : vector<10x84xf32> to vector<10x84xbf16>
    %cst_43 = arith.constant dense<0.000000e+00> : vector<10x100xf32>
    %73 = tpu.matmul %72, %71, %cst_43 {dimension_numbers = #tpu.dot_dimension_numbers<[1], [0], [0], [1], [0, 0, 1, 1], [], []>} : vector<10x84xbf16>, vector<84x100xbf16>, vector<10x100xf32> -> vector<10x100xf32>
    %74 = arith.addf %68, %73 : vector<10x100xf32>
    %c0_44 = arith.constant 0 : index
    %c0_45 = arith.constant 0 : index
    %75 = vector.load %arg6[%c0_44, %c0_45] : memref<1x100xf32, #tpu.memory_space<vmem>>, vector<1x100xf32>
    %76 = vector.broadcast %75 : vector<1x100xf32> to vector<10x100xf32>
    %77 = arith.addf %74, %76 : vector<10x100xf32>
    %78 = math.tanh %77 : vector<10x100xf32>
    %79 = vector.extract_strided_slice %78 {offsets = [0, 0], sizes = [9, 100], strides = [1, 1]} : vector<10x100xf32> to vector<9x100xf32>
    %80 = vector.extract_strided_slice %78 {offsets = [1, 0], sizes = [9, 100], strides = [1, 1]} : vector<10x100xf32> to vector<9x100xf32>
    %81 = arith.maximumf %79, %80 : vector<9x100xf32>
    %82 = vector.extract_strided_slice %81 {offsets = [0, 0], sizes = [9, 99], strides = [1, 1]} : vector<9x100xf32> to vector<9x99xf32>
    %83 = vector.extract_strided_slice %81 {offsets = [0, 1], sizes = [9, 99], strides = [1, 1]} : vector<9x100xf32> to vector<9x99xf32>
    %84 = arith.maximumf %82, %83 : vector<9x99xf32>
    %c0_46 = arith.constant 0 : index
    %c0_47 = arith.constant 0 : index
    %85 = vector.load %arg7[%c0_46, %c0_47] : memref<9x99xf32, #tpu.memory_space<vmem>>, vector<9x99xf32>
    %86 = arith.mulf %84, %85 : vector<9x99xf32>
    %87 = vector.shape_cast %86 : vector<9x99xf32> to vector<1x9x99xf32>
    %cst_48 = arith.constant dense<0.000000e+00> : vector<1xf32>
    %88 = vector.multi_reduction <add>, %87, %cst_48 [1, 2] : vector<1x9x99xf32> to vector<1xf32>
    %89 = vector.shape_cast %88 : vector<1xf32> to vector<1x1x1xf32>
    %90 = vector.extract %89[0, 0, 0] : f32 from vector<1x1x1xf32>
    %c0_49 = arith.constant 0 : index
    %c0_50 = arith.constant 0 : index
    %91 = vector.load %arg8[%c0_49, %c0_50] : memref<2x10xf32, #tpu.memory_space<vmem>>, vector<2x10xf32>
    %92 = vector.extract_strided_slice %91 {offsets = [0, 0], sizes = [1, 10], strides = [1, 1]} : vector<2x10xf32> to vector<1x10xf32>
    %93 = vector.extract_strided_slice %91 {offsets = [1, 0], sizes = [1, 10], strides = [1, 1]} : vector<2x10xf32> to vector<1x10xf32>
    %94 = vector.broadcast %90 : f32 to vector<1x10xf32>
    %95 = arith.mulf %94, %93 : vector<1x10xf32>
    %96 = arith.subf %92, %95 : vector<1x10xf32>
    %c0_51 = arith.constant 0 : index
    %c0_52 = arith.constant 0 : index
    %97 = vector.load %arg9[%c0_51, %c0_52] : memref<1x10xf32, #tpu.memory_space<vmem>>, vector<1x10xf32>
    tpu.vector_store %arg9[%c0_51, %c0_52], %96 {strides = array<i32>} : memref<1x10xf32, #tpu.memory_space<vmem>>, vector<1x10xf32>,
    return
  }
}

</mosaic_0001>

<llo_original>
// kernel: sonianet_forward.1
$region0: #{sonianet_forward.1}
  #allocation0 [shape = 'u32[]', space=smem, size = 0x4, offset = 0x4, fixed_abs, tag = 'smem constant byte address 0x4 - core index']
  #allocation1 [shape = 'u32[72,128]{1,0:T(1,128)}', space=vmem, size = 0x9000, scoped, tag = 'internal scratch']
  %s0 = inlined_call_operand.vmem [shape: f32[32,32], index: 0, kind: input, shape index: {}]
  %s1 = inlined_call_operand.vmem [shape: bf16[5,32,168], index: 1, kind: input, shape index: {}]
  %s2 = inlined_call_operand.vmem [shape: f32[1,168], index: 2, kind: input, shape index: {}]
  %s3 = inlined_call_operand.vmem [shape: bf16[14,27], index: 3, kind: input, shape index: {}]
  %s4 = inlined_call_operand.vmem [shape: bf16[167,84], index: 4, kind: input, shape index: {}]
  %s5 = inlined_call_operand.vmem [shape: bf16[5,84,100], index: 5, kind: input, shape index: {}]
  %s6 = inlined_call_operand.vmem [shape: f32[1,100], index: 6, kind: input, shape index: {}]
  %s7 = inlined_call_operand.vmem [shape: f32[9,99], index: 7, kind: input, shape index: {}]
  %s8 = inlined_call_operand.vmem [shape: f32[2,10], index: 8, kind: input, shape index: {}]
  %s9 = inlined_call_operand.hbm [shape: f32[1,10], index: 9, kind: output, shape index: {}]
  %s10 = sld [smem:[#allocation0]]
  $region46: #{sonianet_forward.1} parent=0
    _
  %s12 = ssub.s32 1, %s10
  %s13 = scalar_select 0, %s12, %s10
  $region1: #{sonianet_forward.1} parent=0
    #allocation2 [shape = 'u8[512]{0}', space=vmem, size = 0x400, scoped, tag = 'output window, operand 0, single buffered']
    #allocation3 [shape = 's32[1]{0}', space=sflag, size = 0x4, scoped, tag = 'scoped memory for sonianet_forward.1']
    %14 = vsyncpa [#allocation3], 0
    // Predicated region
    $region2: #{sonianet_forward.1} parent=1 // pred_check
      _
    $region3: #{sonianet_forward.1} parent=1 // pred_check_branch
      %16 = sbr.rel (0) target = $region5
    $region4: #{sonianet_forward.1} parent=1 // pred_region
      _
    $region5: #{sonianet_forward.1} parent=1 // pred_fallthru
      _
    // Predicated region
    $region6: #{sonianet_forward.1} parent=1 // pred_check
      _
    $region7: #{sonianet_forward.1} parent=1 // pred_check_branch
      %18 = sbr.rel (0) target = $region9
    $region8: #{sonianet_forward.1} parent=1 // pred_region
      _
    $region9: #{sonianet_forward.1} parent=1 // pred_fallthru
      _
    // Predicated region
    $region10: #{sonianet_forward.1} parent=1 // pred_check
      _
    $region11: #{sonianet_forward.1} parent=1 // pred_check_branch
      %20 = sbr.rel (0) target = $region13
    $region12: #{sonianet_forward.1} parent=1 // pred_region
      _
    $region13: #{sonianet_forward.1} parent=1 // pred_fallthru
      _
    // Predicated region
    $region14: #{sonianet_forward.1} parent=1 // pred_check
      _
    $region15: #{sonianet_forward.1} parent=1 // pred_check_branch
      %22 = sbr.rel (0) target = $region17
    $region16: #{sonianet_forward.1} parent=1 // pred_region
      _
    $region17: #{sonianet_forward.1} parent=1 // pred_fallthru
      _
    // Predicated region
    $region18: #{sonianet_forward.1} parent=1 // pred_check
      _
    $region19: #{sonianet_forward.1} parent=1 // pred_check_branch
      %24 = sbr.rel (0) target = $region21
    $region20: #{sonianet_forward.1} parent=1 // pred_region
      _
    $region21: #{sonianet_forward.1} parent=1 // pred_fallthru
      _
    // Predicated region
    $region22: #{sonianet_forward.1} parent=1 // pred_check
      _
    $region23: #{sonianet_forward.1} parent=1 // pred_check_branch
      %26 = sbr.rel (0) target = $region25
    $region24: #{sonianet_forward.1} parent=1 // pred_region
      _
    $region25: #{sonianet_forward.1} parent=1 // pred_fallthru
      _
    // Predicated region
    $region26: #{sonianet_forward.1} parent=1 // pred_check
      _
    $region27: #{sonianet_forward.1} parent=1 // pred_check_branch
      %28 = sbr.rel (0) target = $region29
    $region28: #{sonianet_forward.1} parent=1 // pred_region
      _
    $region29: #{sonianet_forward.1} parent=1 // pred_fallthru
      _
    // Predicated region
    $region30: #{sonianet_forward.1} parent=1 // pred_check
      _
    $region31: #{sonianet_forward.1} parent=1 // pred_check_branch
      %30 = sbr.rel (0) target = $region33
    $region32: #{sonianet_forward.1} parent=1 // pred_region
      _
    $region33: #{sonianet_forward.1} parent=1 // pred_fallthru
      _
    // Predicated region
    $region34: #{sonianet_forward.1} parent=1 // pred_check
      _
    $region35: #{sonianet_forward.1} parent=1 // pred_check_branch
      %32 = sbr.rel (0) target = $region37
    $region36: #{sonianet_forward.1} parent=1 // pred_region
      _
    $region37: #{sonianet_forward.1} parent=1 // pred_fallthru
      _
    %v34 = vld [vmem:[%s0] sm:$0xff]
    %v35 = vld [vmem:[%s0 + $0x8] sm:$0xff]
    %v36 = vld [vmem:[%s0 + $0x10] sm:$0xff]
    %v37 = vld [vmem:[%s0 + $0x18] sm:$0xff]
    %v38 = vld [vmem:[%s1] sm:$0xff]
    %v39 = vld [vmem:[%s1 + $0x8] sm:$0xff]
    %v40 = vld [vmem:[%s1 + $0x10] sm:$0xff]
    %v41 = vld [vmem:[%s1 + $0x18] sm:$0xff]
    %v42 = vpack.c.bf16 %v35, %v34
    %v43 = vpack.c.bf16 %v37, %v36
    %s44 = scalar_lea.vmem %s1, 32
    %v45 = vld [vmem:[%s44] sm:$0xff]
    %v46 = vld [vmem:[%s44 + $0x8] sm:$0xff]
    %v47 = vld [vmem:[%s44 + $0x10] sm:$0xff]
    %v48 = vld [vmem:[%s44 + $0x18] sm:$0xff]
    %vm49 = vsmask.f32 7424
    %v51 = vshrl.u32 %v42, 16
    %v53 = vshll.u32 %v42, 16
    %v55 = vrot.slane %v53, 1
    %v56 = vor.u32 %v51, %v55
    %v58 = vshll.u32 %v43, 16
    %v60 = vrot.slane %v58, 1
    %v61 = vsel %vm49, %v56, %v60
    %v62 = vshrl.u32 %v43, 16
    %v64 = vor.u32 %v62, %v60
    %v69 = vunpack.c.l.b16 %v45
    %v70 = vunpack.c.h.b16 %v45
    %v71 = vunpack.c.l.b16 %v46
    %v72 = vunpack.c.h.b16 %v46
    %v73 = vunpack.c.l.b16 %v47
    %v74 = vunpack.c.h.b16 %v47
    %v75 = vunpack.c.l.b16 %v48
    %v76 = vunpack.c.h.b16 %v48
    %v77 = vpack.c.b16 %v71, %v69
    %v78 = vpack.c.b16 %v72, %v70
    %v79 = vpack.c.b16 %v75, %v73
    %v80 = vpack.c.b16 %v76, %v74
    %vm85 = vcmask 261120
    %v87 = vsel %vm85, %v61, 0
    %v90 = vsel %vm85, %v64, 0
    %92 = vmatpush.bf16.msra.mxu0 0
    %93 = vmatpush.bf16.msra.mxu0 0
    %94 = vmatpush.bf16.msra.mxu0 0
    %95 = vmatpush.bf16.msra.mxu0 0
    %96 = vmatpush.bf16.msra.mxu0 0
    %97 = vmatpush.bf16.msra.mxu0 0
    %98 = vmatpush.bf16.msra.mxu0 %v79
    %99 = vmatpush.bf16.msra.mxu0 %v77
    %100 = vmatmul.bf16.gmra.mxu0 %v87
    %v101 = vpop.f32.mrf.mxu0
    %v102 = vadd.f32 0.0, %v101
    %v103 = vpop.f32.mrf.mxu0
    %v104 = vadd.f32 0.0, %v103
    %105 = vmatmul.bf16.gmra.mxu0 %v90
    %v106 = vpop.f32.mrf.mxu0
    %v107 = vadd.f32 0.0, %v106
    %v108 = vpop.f32.mrf.mxu0
    %v109 = vadd.f32 0.0, %v108
    %110 = vdwg.mxu0
    %111 = vmatpush.bf16.msra.mxu0 0
    %112 = vmatpush.bf16.msra.mxu0 0
    %113 = vmatpush.bf16.msra.mxu0 0
    %114 = vmatpush.bf16.msra.mxu0 0
    %115 = vmatpush.bf16.msra.mxu0 0
    %116 = vmatpush.bf16.msra.mxu0 0
    %117 = vmatpush.bf16.msra.mxu0 %v80
    %118 = vmatpush.bf16.msra.mxu0 %v78
    %119 = vmatmul.bf16.gmra.mxu0 %v87
    %v120 = vpop.f32.mrf.mxu0
    %v121 = vadd.f32 0.0, %v120
    %v122 = vpop.f32.mrf.mxu0
    %v123 = vadd.f32 0.0, %v122
    %124 = vmatmul.bf16.gmra.mxu0 %v90
    %v125 = vpop.f32.mrf.mxu0
    %v126 = vadd.f32 0.0, %v125
    %v127 = vpop.f32.mrf.mxu0
    %v128 = vadd.f32 0.0, %v127
    %129 = vdwg.mxu0
    %v134 = vunpack.c.l.b16 %v38
    %v135 = vunpack.c.h.b16 %v38
    %v136 = vunpack.c.l.b16 %v39
    %v137 = vunpack.c.h.b16 %v39
    %v138 = vunpack.c.l.b16 %v40
    %v139 = vunpack.c.h.b16 %v40
    %v140 = vunpack.c.l.b16 %v41
    %v141 = vunpack.c.h.b16 %v41
    %v142 = vpack.c.b16 %v136, %v134
    %v143 = vpack.c.b16 %v137, %v135
    %v144 = vpack.c.b16 %v140, %v138
    %v145 = vpack.c.b16 %v141, %v139
    %v150 = vsel %vm85, %v42, 0
    %v152 = vsel %vm85, %v43, 0
    %154 = vmatpush.bf16.msra.mxu0 0
    %155 = vmatpush.bf16.msra.mxu0 0
    %156 = vmatpush.bf16.msra.mxu0 0
    %157 = vmatpush.bf16.msra.mxu0 0
    %158 = vmatpush.bf16.msra.mxu0 0
    %159 = vmatpush.bf16.msra.mxu0 0
    %160 = vmatpush.bf16.msra.mxu0 %v144
    %161 = vmatpush.bf16.msra.mxu0 %v142
    %162 = vmatmul.bf16.gmra.mxu0 %v150
    %v163 = vpop.f32.mrf.mxu0
    %v164 = vadd.f32 %v102, %v163
    %v165 = vpop.f32.mrf.mxu0
    %v166 = vadd.f32 %v104, %v165
    %167 = vmatmul.bf16.gmra.mxu0 %v152
    %v168 = vpop.f32.mrf.mxu0
    %v169 = vadd.f32 %v107, %v168
    %v170 = vpop.f32.mrf.mxu0
    %v171 = vadd.f32 %v109, %v170
    %172 = vdwg.mxu0
    %173 = vmatpush.bf16.msra.mxu0 0
    %174 = vmatpush.bf16.msra.mxu0 0
    %175 = vmatpush.bf16.msra.mxu0 0
    %176 = vmatpush.bf16.msra.mxu0 0
    %177 = vmatpush.bf16.msra.mxu0 0
    %178 = vmatpush.bf16.msra.mxu0 0
    %179 = vmatpush.bf16.msra.mxu0 %v145
    %180 = vmatpush.bf16.msra.mxu0 %v143
    %181 = vmatmul.bf16.gmra.mxu0 %v150
    %v182 = vpop.f32.mrf.mxu0
    %v183 = vadd.f32 %v121, %v182
    %v184 = vpop.f32.mrf.mxu0
    %v185 = vadd.f32 %v123, %v184
    %186 = vmatmul.bf16.gmra.mxu0 %v152
    %v187 = vpop.f32.mrf.mxu0
    %v188 = vadd.f32 %v126, %v187
    %v189 = vpop.f32.mrf.mxu0
    %v190 = vadd.f32 %v128, %v189
    %191 = vdwg.mxu0
    %s192 = scalar_lea.vmem %s1, 64
    %v193 = vld [vmem:[%s192] sm:$0xff]
    %v194 = vld [vmem:[%s192 + $0x8] sm:$0xff]
    %v195 = vld [vmem:[%s192 + $0x10] sm:$0xff]
    %v196 = vld [vmem:[%s192 + $0x18] sm:$0xff]
    %vm199 = vcmask 1046528
    %v200 = vrot.slane %v42, 1
    %v201 = vrot.slane %v43, 1
    %v202 = vsel %vm199, %v200, %v201
    %v207 = vunpack.c.l.b16 %v193
    %v208 = vunpack.c.h.b16 %v193
    %v209 = vunpack.c.l.b16 %v194
    %v210 = vunpack.c.h.b16 %v194
    %v211 = vunpack.c.l.b16 %v195
    %v212 = vunpack.c.h.b16 %v195
    %v213 = vunpack.c.l.b16 %v196
    %v214 = vunpack.c.h.b16 %v196
    %v215 = vpack.c.b16 %v209, %v207
    %v216 = vpack.c.b16 %v210, %v208
    %v217 = vpack.c.b16 %v213, %v211
    %v218 = vpack.c.b16 %v214, %v212
    %v224 = vsel %vm85, %v202, 0
    %v227 = vsel %vm85, %v201, 0
    %229 = vmatpush.bf16.msra.mxu0 0
    %230 = vmatpush.bf16.msra.mxu0 0
    %231 = vmatpush.bf16.msra.mxu0 0
    %232 = vmatpush.bf16.msra.mxu0 0
    %233 = vmatpush.bf16.msra.mxu0 0
    %234 = vmatpush.bf16.msra.mxu0 0
    %235 = vmatpush.bf16.msra.mxu0 %v217
    %236 = vmatpush.bf16.msra.mxu0 %v215
    %237 = vmatmul.bf16.gmra.mxu0 %v224
    %v238 = vpop.f32.mrf.mxu0
    %v239 = vadd.f32 0.0, %v238
    %v240 = vpop.f32.mrf.mxu0
    %v241 = vadd.f32 0.0, %v240
    %242 = vmatmul.bf16.gmra.mxu0 %v227
    %v243 = vpop.f32.mrf.mxu0
    %v244 = vadd.f32 0.0, %v243
    %v245 = vpop.f32.mrf.mxu0
    %v246 = vadd.f32 0.0, %v245
    %247 = vdwg.mxu0
    %248 = vmatpush.bf16.msra.mxu0 0
    %249 = vmatpush.bf16.msra.mxu0 0
    %250 = vmatpush.bf16.msra.mxu0 0
    %251 = vmatpush.bf16.msra.mxu0 0
    %252 = vmatpush.bf16.msra.mxu0 0
    %253 = vmatpush.bf16.msra.mxu0 0
    %254 = vmatpush.bf16.msra.mxu0 %v218
    %255 = vmatpush.bf16.msra.mxu0 %v216
    %256 = vmatmul.bf16.gmra.mxu0 %v224
    %v257 = vpop.f32.mrf.mxu0
    %v258 = vadd.f32 0.0, %v257
    %v259 = vpop.f32.mrf.mxu0
    %v260 = vadd.f32 0.0, %v259
    %261 = vmatmul.bf16.gmra.mxu0 %v227
    %v262 = vpop.f32.mrf.mxu0
    %v263 = vadd.f32 0.0, %v262
    %v264 = vpop.f32.mrf.mxu0
    %v265 = vadd.f32 0.0, %v264
    %266 = vdwg.mxu0
    %v267 = vadd.f32 %v164, %v239
    %v268 = vadd.f32 %v183, %v258
    %v269 = vadd.f32 %v166, %v241
    %v270 = vadd.f32 %v185, %v260
    %v271 = vadd.f32 %v169, %v244
    %v272 = vadd.f32 %v188, %v263
    %v273 = vadd.f32 %v171, %v246
    %v274 = vadd.f32 %v190, %v265
    %s275 = scalar_lea.vmem %s1, 96
    %v276 = vld [vmem:[%s275] sm:$0xff]
    %v277 = vld [vmem:[%s275 + $0x8] sm:$0xff]
    %v278 = vld [vmem:[%s275 + $0x10] sm:$0xff]
    %v279 = vld [vmem:[%s275 + $0x18] sm:$0xff]
    %vm280 = vsmask.f32 6400
    %v281 = vrot.slane %v51, 1
    %v282 = vrot.slane %v53, 2
    %v283 = vor.u32 %v281, %v282
    %v284 = vrot.slane %v62, 1
    %v285 = vrot.slane %v58, 2
    %v286 = vor.u32 %v284, %v285
    %v287 = vsel %vm280, %v283, %v286
    %v292 = vunpack.c.l.b16 %v276
    %v293 = vunpack.c.h.b16 %v276
    %v294 = vunpack.c.l.b16 %v277
    %v295 = vunpack.c.h.b16 %v277
    %v296 = vunpack.c.l.b16 %v278
    %v297 = vunpack.c.h.b16 %v278
    %v298 = vunpack.c.l.b16 %v279
    %v299 = vunpack.c.h.b16 %v279
    %v300 = vpack.c.b16 %v294, %v292
    %v301 = vpack.c.b16 %v295, %v293
    %v302 = vpack.c.b16 %v298, %v296
    %v303 = vpack.c.b16 %v299, %v297
    %v309 = vsel %vm85, %v287, 0
    %v312 = vsel %vm85, %v286, 0
    %314 = vmatpush.bf16.msra.mxu0 0
    %315 = vmatpush.bf16.msra.mxu0 0
    %316 = vmatpush.bf16.msra.mxu0 0
    %317 = vmatpush.bf16.msra.mxu0 0
    %318 = vmatpush.bf16.msra.mxu0 0
    %319 = vmatpush.bf16.msra.mxu0 0
    %320 = vmatpush.bf16.msra.mxu0 %v302
    %321 = vmatpush.bf16.msra.mxu0 %v300
    %322 = vmatmul.bf16.gmra.mxu0 %v309
    %v323 = vpop.f32.mrf.mxu0
    %v324 = vadd.f32 0.0, %v323
    %v325 = vpop.f32.mrf.mxu0
    %v326 = vadd.f32 0.0, %v325
    %327 = vmatmul.bf16.gmra.mxu0 %v312
    %v328 = vpop.f32.mrf.mxu0
    %v329 = vadd.f32 0.0, %v328
    %v330 = vpop.f32.mrf.mxu0
    %v331 = vadd.f32 0.0, %v330
    %332 = vdwg.mxu0
    %333 = vmatpush.bf16.msra.mxu0 0
    %334 = vmatpush.bf16.msra.mxu0 0
    %335 = vmatpush.bf16.msra.mxu0 0
    %336 = vmatpush.bf16.msra.mxu0 0
    %337 = vmatpush.bf16.msra.mxu0 0
    %338 = vmatpush.bf16.msra.mxu0 0
    %339 = vmatpush.bf16.msra.mxu0 %v303
    %340 = vmatpush.bf16.msra.mxu0 %v301
    %341 = vmatmul.bf16.gmra.mxu0 %v309
    %v342 = vpop.f32.mrf.mxu0
    %v343 = vadd.f32 0.0, %v342
    %v344 = vpop.f32.mrf.mxu0
    %v345 = vadd.f32 0.0, %v344
    %346 = vmatmul.bf16.gmra.mxu0 %v312
    %v347 = vpop.f32.mrf.mxu0
    %v348 = vadd.f32 0.0, %v347
    %v349 = vpop.f32.mrf.mxu0
    %v350 = vadd.f32 0.0, %v349
    %351 = vdwg.mxu0
    %v352 = vadd.f32 %v267, %v324
    %v353 = vadd.f32 %v268, %v343
    %v354 = vadd.f32 %v269, %v326
    %v355 = vadd.f32 %v270, %v345
    %v356 = vadd.f32 %v271, %v329
    %v357 = vadd.f32 %v272, %v348
    %v358 = vadd.f32 %v273, %v331
    %v359 = vadd.f32 %v274, %v350
    %s360 = scalar_lea.vmem %s1, 128
    %v361 = vld [vmem:[%s360] sm:$0xff]
    %v362 = vld [vmem:[%s360 + $0x8] sm:$0xff]
    %v363 = vld [vmem:[%s360 + $0x10] sm:$0xff]
    %v364 = vld [vmem:[%s360 + $0x18] sm:$0xff]
    %vm365 = vcmask 1045504
    %v366 = vrot.slane %v42, 2
    %v367 = vrot.slane %v43, 2
    %v368 = vsel %vm365, %v366, %v367
    %v373 = vunpack.c.l.b16 %v361
    %v374 = vunpack.c.h.b16 %v361
    %v375 = vunpack.c.l.b16 %v362
    %v376 = vunpack.c.h.b16 %v362
    %v377 = vunpack.c.l.b16 %v363
    %v378 = vunpack.c.h.b16 %v363
    %v379 = vunpack.c.l.b16 %v364
    %v380 = vunpack.c.h.b16 %v364
    %v381 = vpack.c.b16 %v375, %v373
    %v382 = vpack.c.b16 %v376, %v374
    %v383 = vpack.c.b16 %v379, %v377
    %v384 = vpack.c.b16 %v380, %v378
    %v390 = vsel %vm85, %v368, 0
    %v393 = vsel %vm85, %v367, 0
    %395 = vmatpush.bf16.msra.mxu0 0
    %396 = vmatpush.bf16.msra.mxu0 0
    %397 = vmatpush.bf16.msra.mxu0 0
    %398 = vmatpush.bf16.msra.mxu0 0
    %399 = vmatpush.bf16.msra.mxu0 0
    %400 = vmatpush.bf16.msra.mxu0 0
    %401 = vmatpush.bf16.msra.mxu0 %v383
    %402 = vmatpush.bf16.msra.mxu0 %v381
    %403 = vmatmul.bf16.gmra.mxu0 %v390
    %v404 = vpop.f32.mrf.mxu0
    %v405 = vadd.f32 0.0, %v404
    %v406 = vpop.f32.mrf.mxu0
    %v407 = vadd.f32 0.0, %v406
    %408 = vmatmul.bf16.gmra.mxu0 %v393
    %v409 = vpop.f32.mrf.mxu0
    %v410 = vadd.f32 0.0, %v409
    %v411 = vpop.f32.mrf.mxu0
    %v412 = vadd.f32 0.0, %v411
    %413 = vdwg.mxu0
    %414 = vmatpush.bf16.msra.mxu0 0
    %415 = vmatpush.bf16.msra.mxu0 0
    %416 = vmatpush.bf16.msra.mxu0 0
    %417 = vmatpush.bf16.msra.mxu0 0
    %418 = vmatpush.bf16.msra.mxu0 0
    %419 = vmatpush.bf16.msra.mxu0 0
    %420 = vmatpush.bf16.msra.mxu0 %v384
    %421 = vmatpush.bf16.msra.mxu0 %v382
    %422 = vmatmul.bf16.gmra.mxu0 %v390
    %v423 = vpop.f32.mrf.mxu0
    %v424 = vadd.f32 0.0, %v423
    %v425 = vpop.f32.mrf.mxu0
    %v426 = vadd.f32 0.0, %v425
    %427 = vmatmul.bf16.gmra.mxu0 %v393
    %v428 = vpop.f32.mrf.mxu0
    %v429 = vadd.f32 0.0, %v428
    %v430 = vpop.f32.mrf.mxu0
    %v431 = vadd.f32 0.0, %v430
    %432 = vdwg.mxu0
    %v433 = vadd.f32 %v352, %v405
    %v434 = vadd.f32 %v353, %v424
    %v435 = vadd.f32 %v354, %v407
    %v436 = vadd.f32 %v355, %v426
    %v437 = vadd.f32 %v356, %v410
    %v438 = vadd.f32 %v357, %v429
    %v439 = vadd.f32 %v358, %v412
    %v440 = vadd.f32 %v359, %v431
    %v441 = vld [vmem:[%s2] sm:$0x3]
    %v443 = vperm.slane %v441, 0
    %v444 = vperm.slane %v441, 1
    %v447 = vadd.f32 %v433, %v443
    %v448 = vadd.f32 %v434, %v444
    %v449 = vadd.f32 %v435, %v443
    %v450 = vadd.f32 %v436, %v444
    %v451 = vadd.f32 %v437, %v443
    %v452 = vadd.f32 %v438, %v444
    %v453 = vadd.f32 %v439, %v443
    %v454 = vadd.f32 %v440, %v444
    %v455 = vtanh.pop %v447
    %v456 = vtanh.pop %v448
    %v457 = vtanh.pop %v449
    %v458 = vtanh.pop %v450
    %v459 = vtanh.pop %v451
    %v460 = vtanh.pop %v452
    %v461 = vtanh.pop %v453
    %v462 = vtanh.pop %v454
    %vm471 = vcmask 1046528
    %v472 = vrot.slane %v455, 1
    %v473 = vrot.slane %v457, 1
    %v474 = vsel %vm471, %v472, %v473
    %v475 = vrot.slane %v456, 1
    %v476 = vrot.slane %v458, 1
    %v477 = vsel %vm471, %v475, %v476
    %v478 = vrot.slane %v459, 1
    %v479 = vsel %vm471, %v473, %v478
    %v480 = vrot.slane %v460, 1
    %v481 = vsel %vm471, %v476, %v480
    %v482 = vrot.slane %v461, 1
    %v483 = vsel %vm471, %v478, %v482
    %v484 = vrot.slane %v462, 1
    %v485 = vsel %vm471, %v480, %v484
    %v494 = vmax.f32 %v455, %v474
    %v495 = vmax.f32 %v456, %v477
    %v496 = vmax.f32 %v457, %v479
    %v497 = vmax.f32 %v458, %v481
    %v498 = vmax.f32 %v459, %v483
    %v499 = vmax.f32 %v460, %v485
    %v500 = vmax.f32 %v461, %v482
    %v501 = vmax.f32 %v462, %v484
    %v502 = vld [vmem:[%s3] sm:$0xf]
    %v503 = vld [vmem:[%s3 + $0x4] sm:$0x7]
    %v504 = vpack.c.bf16 %v496, %v494
    %v505 = vpack.c.bf16 %v497, %v495
    %v506 = vpack.c.bf16 %v500, %v498
    %v507 = vpack.c.bf16 %v501, %v499
    %v510 = vunpack.c.l.b16 %v502
    %v511 = vunpack.c.l.b16 %v503
    %v512 = vpack.c.b16 %v511, %v510
    %vm513 = vcmask 220160
    %v515 = vsel %vm513, %v512, 0
    %vm517 = vcmask 1044480
    %vm518 = vcmask 1045504
    %v519 = vsel %vm517, 4294967295, 65535
    %v520 = vsel %vm518, %v519, 0
    %v522 = vand.u32 %v506, %v520
    %v525 = vand.u32 %v507, %v520
    %527 = vmatpush.bf16.msra.mxu0 0
    %528 = vmatpush.bf16.msra.mxu0 0
    %529 = vmatpush.bf16.msra.mxu0 0
    %530 = vmatpush.bf16.msra.mxu0 0
    %531 = vmatpush.bf16.msra.mxu0 0
    %532 = vmatpush.bf16.msra.mxu0 0
    %533 = vmatpush.bf16.msra.mxu0 %v522
    %534 = vmatpush.bf16.msra.mxu0 %v504
    %535 = vmatmul.bf16.gmra.mxu0 %v515
    %v536 = vpop.f32.mrf.mxu0
    %v537 = vadd.f32 0.0, %v536
    %v538 = vpop.f32.mrf.mxu0
    %v539 = vadd.f32 0.0, %v538
    %540 = vdwg.mxu0
    %541 = vmatpush.bf16.msra.mxu0 0
    %542 = vmatpush.bf16.msra.mxu0 0
    %543 = vmatpush.bf16.msra.mxu0 0
    %544 = vmatpush.bf16.msra.mxu0 0
    %545 = vmatpush.bf16.msra.mxu0 0
    %546 = vmatpush.bf16.msra.mxu0 0
    %547 = vmatpush.bf16.msra.mxu0 %v525
    %548 = vmatpush.bf16.msra.mxu0 %v505
    %549 = vmatmul.bf16.gmra.mxu0 %v515
    %v550 = vpop.f32.mrf.mxu0
    %v551 = vadd.f32 0.0, %v550
    %v552 = vpop.f32.mrf.mxu0
    %v553 = vadd.f32 0.0, %v552
    %554 = vdwg.mxu0
    %559 = vrot.lane.b32.xlu0 %v537, 127
    %v560 = vpop.permute.xlu0 %559
    %561 = vrot.lane.b32.xlu0 %v551, 127
    %v562 = vpop.permute.xlu0 %561
    %563 = vrot.lane.b32.xlu0 %v539, 127
    %v564 = vpop.permute.xlu0 %563
    %565 = vrot.lane.b32.xlu0 %v553, 127
    %v566 = vpop.permute.xlu0 %565
    %vm567 = vcmask 1039360
    %v568 = vsel %vm567, %v560, %v562
    %v569 = vsel %vm567, %v564, %v566
    %v574 = vmax.f32 %v537, %v568
    %v575 = vmax.f32 %v551, %v562
    %v576 = vmax.f32 %v539, %v569
    %v577 = vmax.f32 %v553, %v566
    %v578 = vld [vmem:[%s4] sm:$0xf]
    %v579 = vld [vmem:[%s4 + $0x4] sm:$0xf]
    %v580 = vld [vmem:[%s4 + $0x8] sm:$0xf]
    %v581 = vld [vmem:[%s4 + $0xc] sm:$0xf]
    %v582 = vld [vmem:[%s4 + $0x10] sm:$0xf]
    %v583 = vld [vmem:[%s4 + $0x14] sm:$0xf]
    %v584 = vld [vmem:[%s4 + $0x18] sm:$0xf]
    %v585 = vld [vmem:[%s4 + $0x1c] sm:$0xf]
    %v586 = vld [vmem:[%s4 + $0x20] sm:$0xf]
    %v587 = vld [vmem:[%s4 + $0x24] sm:$0xf]
    %v588 = vld [vmem:[%s4 + $0x28] sm:$0xf]
    %v589 = vld [vmem:[%s4 + $0x2c] sm:$0xf]
    %v590 = vld [vmem:[%s4 + $0x30] sm:$0xf]
    %v591 = vld [vmem:[%s4 + $0x34] sm:$0xf]
    %v592 = vld [vmem:[%s4 + $0x38] sm:$0xf]
    %v593 = vld [vmem:[%s4 + $0x3c] sm:$0xf]
    %v594 = vld [vmem:[%s4 + $0x40] sm:$0xf]
    %v595 = vld [vmem:[%s4 + $0x44] sm:$0xf]
    %v596 = vld [vmem:[%s4 + $0x48] sm:$0xf]
    %v597 = vld [vmem:[%s4 + $0x4c] sm:$0xf]
    %v598 = vld [vmem:[%s4 + $0x50] sm:$0xf]
    %v599 = vpack.c.bf16 %v576, %v574
    %v600 = vpack.c.bf16 %v577, %v575
    %v622 = vunpack.c.l.b16 %v578
    %v623 = vunpack.c.l.b16 %v579
    %v624 = vunpack.c.l.b16 %v580
    %v625 = vunpack.c.l.b16 %v581
    %v626 = vunpack.c.l.b16 %v582
    %v627 = vunpack.c.l.b16 %v583
    %v628 = vunpack.c.l.b16 %v584
    %v629 = vunpack.c.l.b16 %v585
    %v630 = vunpack.c.l.b16 %v586
    %v631 = vunpack.c.l.b16 %v587
    %v632 = vunpack.c.l.b16 %v588
    %v633 = vunpack.c.l.b16 %v589
    %v634 = vunpack.c.l.b16 %v590
    %v635 = vunpack.c.l.b16 %v591
    %v636 = vunpack.c.l.b16 %v592
    %v637 = vunpack.c.l.b16 %v593
    %v638 = vunpack.c.l.b16 %v594
    %v639 = vunpack.c.l.b16 %v595
    %v640 = vunpack.c.l.b16 %v596
    %v641 = vunpack.c.l.b16 %v597
    %v642 = vunpack.c.l.b16 %v598
    %v643 = vpack.c.b16 %v623, %v622
    %v644 = vpack.c.b16 %v625, %v624
    %v645 = vpack.c.b16 %v627, %v626
    %v646 = vpack.c.b16 %v629, %v628
    %v647 = vpack.c.b16 %v631, %v630
    %v648 = vpack.c.b16 %v633, %v632
    %v649 = vpack.c.b16 %v635, %v634
    %v650 = vpack.c.b16 %v637, %v636
    %v651 = vpack.c.b16 %v639, %v638
    %v652 = vpack.c.b16 %v641, %v640
    %v653 = vpack.c.b16 %v642, %v642
    %vm664 = vcmask 318464
    %v666 = vsel %vm664, %v600, 0
    %vm668 = vcmask 1042432
    %vm669 = vcmask 1043456
    %v670 = vsel %vm668, 4294967295, 65535
    %v671 = vsel %vm669, %v670, 0
    %v673 = vand.u32 %v653, %v671
    %675 = vmatpush.bf16.msra.mxu0 %v650
    %676 = vmatpush.bf16.msra.mxu0 %v649
    %677 = vmatpush.bf16.msra.mxu0 %v648
    %678 = vmatpush.bf16.msra.mxu0 %v647
    %679 = vmatpush.bf16.msra.mxu0 %v646
    %680 = vmatpush.bf16.msra.mxu0 %v645
    %681 = vmatpush.bf16.msra.mxu0 %v644
    %682 = vmatpush.bf16.msra.mxu0 %v643
    %683 = vmatmul.bf16.gmra.mxu0 %v599
    %v684 = vpop.f32.mrf.mxu0
    %v685 = vadd.f32 0.0, %v684
    %v686 = vpop.f32.mrf.mxu0
    %v687 = vadd.f32 0.0, %v686
    %688 = vdwg.mxu0
    %689 = vmatpush.bf16.msra.mxu0 0
    %690 = vmatpush.bf16.msra.mxu0 0
    %691 = vmatpush.bf16.msra.mxu0 0
    %692 = vmatpush.bf16.msra.mxu0 0
    %693 = vmatpush.bf16.msra.mxu0 0
    %694 = vmatpush.bf16.msra.mxu0 %v673
    %695 = vmatpush.bf16.msra.mxu0 %v652
    %696 = vmatpush.bf16.msra.mxu0 %v651
    %697 = vmatmul.bf16.gmra.mxu0 %v666
    %v698 = vpop.f32.mrf.mxu0
    %v699 = vadd.f32 %v685, %v698
    %v700 = vpop.f32.mrf.mxu0
    %v701 = vadd.f32 %v687, %v700
    %702 = vdwg.mxu0
    %v703 = vld [vmem:[%s5] sm:$0xf]
    %v704 = vld [vmem:[%s5 + $0x4] sm:$0xf]
    %v705 = vld [vmem:[%s5 + $0x8] sm:$0xf]
    %v706 = vld [vmem:[%s5 + $0xc] sm:$0xf]
    %v707 = vld [vmem:[%s5 + $0x10] sm:$0xf]
    %v708 = vld [vmem:[%s5 + $0x14] sm:$0xf]
    %v709 = vld [vmem:[%s5 + $0x18] sm:$0xf]
    %v710 = vld [vmem:[%s5 + $0x1c] sm:$0xf]
    %v711 = vld [vmem:[%s5 + $0x20] sm:$0xf]
    %v712 = vld [vmem:[%s5 + $0x24] sm:$0xf]
    %v713 = vld [vmem:[%s5 + $0x28] sm:$0x3]
    %v714 = vpack.c.bf16 %v701, %v699
    %s715 = scalar_lea.vmem %s5, 44
    %v716 = vld [vmem:[%s715] sm:$0xf]
    %v717 = vld [vmem:[%s715 + $0x4] sm:$0xf]
    %v718 = vld [vmem:[%s715 + $0x8] sm:$0xf]
    %v719 = vld [vmem:[%s715 + $0xc] sm:$0xf]
    %v720 = vld [vmem:[%s715 + $0x10] sm:$0xf]
    %v721 = vld [vmem:[%s715 + $0x14] sm:$0xf]
    %v722 = vld [vmem:[%s715 + $0x18] sm:$0xf]
    %v723 = vld [vmem:[%s715 + $0x1c] sm:$0xf]
    %v724 = vld [vmem:[%s715 + $0x20] sm:$0xf]
    %v725 = vld [vmem:[%s715 + $0x24] sm:$0xf]
    %v726 = vld [vmem:[%s715 + $0x28] sm:$0x3]
    %v728 = vshrl.u32 %v714, 16
    %v730 = vshll.u32 %v714, 16
    %v732 = vrot.slane %v730, 1
    %v733 = vor.u32 %v728, %v732
    %v745 = vunpack.c.l.b16 %v716
    %v746 = vunpack.c.l.b16 %v717
    %v747 = vunpack.c.l.b16 %v718
    %v748 = vunpack.c.l.b16 %v719
    %v749 = vunpack.c.l.b16 %v720
    %v750 = vunpack.c.l.b16 %v721
    %v751 = vunpack.c.l.b16 %v722
    %v752 = vunpack.c.l.b16 %v723
    %v753 = vunpack.c.l.b16 %v724
    %v754 = vunpack.c.l.b16 %v725
    %v755 = vunpack.c.l.b16 %v726
    %v756 = vpack.c.b16 %v746, %v745
    %v757 = vpack.c.b16 %v748, %v747
    %v758 = vpack.c.b16 %v750, %v749
    %v759 = vpack.c.b16 %v752, %v751
    %v760 = vpack.c.b16 %v754, %v753
    %v761 = vpack.c.b16 %v755, %v755
    %vm767 = vcmask 687104
    %v769 = vsel %vm767, %v733, 0
    %vm771 = vcmask 1041408
    %v773 = vsel %vm771, %v761, 0
    %775 = vmatpush.bf16.msra.mxu0 0
    %776 = vmatpush.bf16.msra.mxu0 0
    %777 = vmatpush.bf16.msra.mxu0 %v773
    %778 = vmatpush.bf16.msra.mxu0 %v760
    %779 = vmatpush.bf16.msra.mxu0 %v759
    %780 = vmatpush.bf16.msra.mxu0 %v758
    %781 = vmatpush.bf16.msra.mxu0 %v757
    %782 = vmatpush.bf16.msra.mxu0 %v756
    %783 = vmatmul.bf16.gmra.mxu0 %v769
    %v784 = vpop.f32.mrf.mxu0
    %v785 = vadd.f32 0.0, %v784
    %v786 = vpop.f32.mrf.mxu0
    %v787 = vadd.f32 0.0, %v786
    %788 = vdwg.mxu0
    %v800 = vunpack.c.l.b16 %v703
    %v801 = vunpack.c.l.b16 %v704
    %v802 = vunpack.c.l.b16 %v705
    %v803 = vunpack.c.l.b16 %v706
    %v804 = vunpack.c.l.b16 %v707
    %v805 = vunpack.c.l.b16 %v708
    %v806 = vunpack.c.l.b16 %v709
    %v807 = vunpack.c.l.b16 %v710
    %v808 = vunpack.c.l.b16 %v711
    %v809 = vunpack.c.l.b16 %v712
    %v810 = vunpack.c.l.b16 %v713
    %v811 = vpack.c.b16 %v801, %v800
    %v812 = vpack.c.b16 %v803, %v802
    %v813 = vpack.c.b16 %v805, %v804
    %v814 = vpack.c.b16 %v807, %v806
    %v815 = vpack.c.b16 %v809, %v808
    %v816 = vpack.c.b16 %v810, %v810
    %v822 = vsel %vm767, %v714, 0
    %v825 = vsel %vm771, %v816, 0
    %827 = vmatpush.bf16.msra.mxu0 0
    %828 = vmatpush.bf16.msra.mxu0 0
    %829 = vmatpush.bf16.msra.mxu0 %v825
    %830 = vmatpush.bf16.msra.mxu0 %v815
    %831 = vmatpush.bf16.msra.mxu0 %v814
    %832 = vmatpush.bf16.msra.mxu0 %v813
    %833 = vmatpush.bf16.msra.mxu0 %v812
    %834 = vmatpush.bf16.msra.mxu0 %v811
    %835 = vmatmul.bf16.gmra.mxu0 %v822
    %v836 = vpop.f32.mrf.mxu0
    %v837 = vadd.f32 %v785, %v836
    %v838 = vpop.f32.mrf.mxu0
    %v839 = vadd.f32 %v787, %v838
    %840 = vdwg.mxu0
    %s841 = scalar_lea.vmem %s5, 88
    %v842 = vld [vmem:[%s841] sm:$0xf]
    %v843 = vld [vmem:[%s841 + $0x4] sm:$0xf]
    %v844 = vld [vmem:[%s841 + $0x8] sm:$0xf]
    %v845 = vld [vmem:[%s841 + $0xc] sm:$0xf]
    %v846 = vld [vmem:[%s841 + $0x10] sm:$0xf]
    %v847 = vld [vmem:[%s841 + $0x14] sm:$0xf]
    %v848 = vld [vmem:[%s841 + $0x18] sm:$0xf]
    %v849 = vld [vmem:[%s841 + $0x1c] sm:$0xf]
    %v850 = vld [vmem:[%s841 + $0x20] sm:$0xf]
    %v851 = vld [vmem:[%s841 + $0x24] sm:$0xf]
    %v852 = vld [vmem:[%s841 + $0x28] sm:$0x3]
    %v854 = vrot.slane %v714, 1
    %v866 = vunpack.c.l.b16 %v842
    %v867 = vunpack.c.l.b16 %v843
    %v868 = vunpack.c.l.b16 %v844
    %v869 = vunpack.c.l.b16 %v845
    %v870 = vunpack.c.l.b16 %v846
    %v871 = vunpack.c.l.b16 %v847
    %v872 = vunpack.c.l.b16 %v848
    %v873 = vunpack.c.l.b16 %v849
    %v874 = vunpack.c.l.b16 %v850
    %v875 = vunpack.c.l.b16 %v851
    %v876 = vunpack.c.l.b16 %v852
    %v877 = vpack.c.b16 %v867, %v866
    %v878 = vpack.c.b16 %v869, %v868
    %v879 = vpack.c.b16 %v871, %v870
    %v880 = vpack.c.b16 %v873, %v872
    %v881 = vpack.c.b16 %v875, %v874
    %v882 = vpack.c.b16 %v876, %v876
    %v889 = vsel %vm767, %v854, 0
    %v892 = vsel %vm771, %v882, 0
    %894 = vmatpush.bf16.msra.mxu0 0
    %895 = vmatpush.bf16.msra.mxu0 0
    %896 = vmatpush.bf16.msra.mxu0 %v892
    %897 = vmatpush.bf16.msra.mxu0 %v881
    %898 = vmatpush.bf16.msra.mxu0 %v880
    %899 = vmatpush.bf16.msra.mxu0 %v879
    %900 = vmatpush.bf16.msra.mxu0 %v878
    %901 = vmatpush.bf16.msra.mxu0 %v877
    %902 = vmatmul.bf16.gmra.mxu0 %v889
    %v903 = vpop.f32.mrf.mxu0
    %v904 = vadd.f32 0.0, %v903
    %v905 = vpop.f32.mrf.mxu0
    %v906 = vadd.f32 0.0, %v905
    %907 = vdwg.mxu0
    %v908 = vadd.f32 %v837, %v904
    %v909 = vadd.f32 %v839, %v906
    %s910 = scalar_lea.vmem %s5, 132
    %v911 = vld [vmem:[%s910] sm:$0xf]
    %v912 = vld [vmem:[%s910 + $0x4] sm:$0xf]
    %v913 = vld [vmem:[%s910 + $0x8] sm:$0xf]
    %v914 = vld [vmem:[%s910 + $0xc] sm:$0xf]
    %v915 = vld [vmem:[%s910 + $0x10] sm:$0xf]
    %v916 = vld [vmem:[%s910 + $0x14] sm:$0xf]
    %v917 = vld [vmem:[%s910 + $0x18] sm:$0xf]
    %v918 = vld [vmem:[%s910 + $0x1c] sm:$0xf]
    %v919 = vld [vmem:[%s910 + $0x20] sm:$0xf]
    %v920 = vld [vmem:[%s910 + $0x24] sm:$0xf]
    %v921 = vld [vmem:[%s910 + $0x28] sm:$0x3]
    %v922 = vrot.slane %v728, 1
    %v923 = vrot.slane %v730, 2
    %v924 = vor.u32 %v922, %v923
    %v936 = vunpack.c.l.b16 %v911
    %v937 = vunpack.c.l.b16 %v912
    %v938 = vunpack.c.l.b16 %v913
    %v939 = vunpack.c.l.b16 %v914
    %v940 = vunpack.c.l.b16 %v915
    %v941 = vunpack.c.l.b16 %v916
    %v942 = vunpack.c.l.b16 %v917
    %v943 = vunpack.c.l.b16 %v918
    %v944 = vunpack.c.l.b16 %v919
    %v945 = vunpack.c.l.b16 %v920
    %v946 = vunpack.c.l.b16 %v921
    %v947 = vpack.c.b16 %v937, %v936
    %v948 = vpack.c.b16 %v939, %v938
    %v949 = vpack.c.b16 %v941, %v940
    %v950 = vpack.c.b16 %v943, %v942
    %v951 = vpack.c.b16 %v945, %v944
    %v952 = vpack.c.b16 %v946, %v946
    %v959 = vsel %vm767, %v924, 0
    %v962 = vsel %vm771, %v952, 0
    %964 = vmatpush.bf16.msra.mxu0 0
    %965 = vmatpush.bf16.msra.mxu0 0
    %966 = vmatpush.bf16.msra.mxu0 %v962
    %967 = vmatpush.bf16.msra.mxu0 %v951
    %968 = vmatpush.bf16.msra.mxu0 %v950
    %969 = vmatpush.bf16.msra.mxu0 %v949
    %970 = vmatpush.bf16.msra.mxu0 %v948
    %971 = vmatpush.bf16.msra.mxu0 %v947
    %972 = vmatmul.bf16.gmra.mxu0 %v959
    %v973 = vpop.f32.mrf.mxu0
    %v974 = vadd.f32 0.0, %v973
    %v975 = vpop.f32.mrf.mxu0
    %v976 = vadd.f32 0.0, %v975
    %977 = vdwg.mxu0
    %v978 = vadd.f32 %v908, %v974
    %v979 = vadd.f32 %v909, %v976
    %s980 = scalar_lea.vmem %s5, 176
    %v981 = vld [vmem:[%s980] sm:$0xf]
    %v982 = vld [vmem:[%s980 + $0x4] sm:$0xf]
    %v983 = vld [vmem:[%s980 + $0x8] sm:$0xf]
    %v984 = vld [vmem:[%s980 + $0xc] sm:$0xf]
    %v985 = vld [vmem:[%s980 + $0x10] sm:$0xf]
    %v986 = vld [vmem:[%s980 + $0x14] sm:$0xf]
    %v987 = vld [vmem:[%s980 + $0x18] sm:$0xf]
    %v988 = vld [vmem:[%s980 + $0x1c] sm:$0xf]
    %v989 = vld [vmem:[%s980 + $0x20] sm:$0xf]
    %v990 = vld [vmem:[%s980 + $0x24] sm:$0xf]
    %v991 = vld [vmem:[%s980 + $0x28] sm:$0x3]
    %v992 = vrot.slane %v714, 2
    %v1004 = vunpack.c.l.b16 %v981
    %v1005 = vunpack.c.l.b16 %v982
    %v1006 = vunpack.c.l.b16 %v983
    %v1007 = vunpack.c.l.b16 %v984
    %v1008 = vunpack.c.l.b16 %v985
    %v1009 = vunpack.c.l.b16 %v986
    %v1010 = vunpack.c.l.b16 %v987
    %v1011 = vunpack.c.l.b16 %v988
    %v1012 = vunpack.c.l.b16 %v989
    %v1013 = vunpack.c.l.b16 %v990
    %v1014 = vunpack.c.l.b16 %v991
    %v1015 = vpack.c.b16 %v1005, %v1004
    %v1016 = vpack.c.b16 %v1007, %v1006
    %v1017 = vpack.c.b16 %v1009, %v1008
    %v1018 = vpack.c.b16 %v1011, %v1010
    %v1019 = vpack.c.b16 %v1013, %v1012
    %v1020 = vpack.c.b16 %v1014, %v1014
    %v1027 = vsel %vm767, %v992, 0
    %v1030 = vsel %vm771, %v1020, 0
    %1032 = vmatpush.bf16.msra.mxu0 0
    %1033 = vmatpush.bf16.msra.mxu0 0
    %1034 = vmatpush.bf16.msra.mxu0 %v1030
    %1035 = vmatpush.bf16.msra.mxu0 %v1019
    %1036 = vmatpush.bf16.msra.mxu0 %v1018
    %1037 = vmatpush.bf16.msra.mxu0 %v1017
    %1038 = vmatpush.bf16.msra.mxu0 %v1016
    %1039 = vmatpush.bf16.msra.mxu0 %v1015
    %1040 = vmatmul.bf16.gmra.mxu0 %v1027
    %v1041 = vpop.f32.mrf.mxu0
    %v1042 = vadd.f32 0.0, %v1041
    %v1043 = vpop.f32.mrf.mxu0
    %v1044 = vadd.f32 0.0, %v1043
    %1045 = vdwg.mxu0
    %v1046 = vadd.f32 %v978, %v1042
    %v1047 = vadd.f32 %v979, %v1044
    %v1048 = vld [vmem:[%s6] sm:$0x1]
    %v1050 = vperm.slane %v1048, 0
    %v1052 = vadd.f32 %v1046, %v1050
    %v1053 = vadd.f32 %v1047, %v1050
    %v1054 = vtanh.pop %v1052
    %v1055 = vtanh.pop %v1053
    %v1058 = vrot.slane %v1054, 1
    %v1059 = vrot.slane %v1055, 1
    %v1060 = vsel %vm471, %v1058, %v1059
    %v1063 = vmax.f32 %v1054, %v1060
    %v1064 = vmax.f32 %v1055, %v1059
    %1067 = vrot.lane.b32.xlu0 %v1063, 127
    %v1068 = vpop.permute.xlu0 %1067
    %1069 = vrot.lane.b32.xlu0 %v1064, 127
    %v1070 = vpop.permute.xlu0 %1069
    %v1073 = vmax.f32 %v1063, %v1068
    %v1074 = vmax.f32 %v1064, %v1070
    %v1075 = vld [vmem:[%s7] sm:$0xff]
    %v1076 = vld [vmem:[%s7 + $0x8] sm:$0x1]
    %v1077 = vmul.f32 %v1073, %v1075
    %v1078 = vmul.f32 %v1074, %v1076
    %vm1079 = vcmask 809984
    %v1080 = vsel %vm1079, %v1077, 0.0
    %vm1081 = vcmask 802816
    %v1082 = vsel %vm1081, %v1078, 0.0
    %v1083 = vadd.f32 %v1080, %v1082
    %1084 = vadd.xlane.f32.xlu0 %v1083
    %v1085 = vpop.xlane.xlu0 %1084
    %v1086 = vrot.slane %v1085, 4
    %v1087 = vadd.f32 %v1085, %v1086
    %v1088 = vrot.slane %v1087, 2
    %v1089 = vadd.f32 %v1087, %v1088
    %v1090 = vrot.slane %v1089, 1
    %v1091 = vadd.f32 %v1089, %v1090
    %s1092 = vtos %v1091
    %v1093 = vld [vmem:[%s8] sm:$0x3]
    %v1094 = vstv %s1092
    %v1095 = vmul.f32 %v1094, %v1093
    %v1097 = vrot.slane %v1095, 1
    %v1099 = vsub.f32 %v1093, %v1097
    %vm1100 = vcmask 73728
    %1101 = vst.msk [vmem:[#allocation2] sm:$0x1] %vm1100, %v1099
    // Predicated region
    $region38: #{sonianet_forward.1} parent=1 // pred_check
      _
    $region39: #{sonianet_forward.1} parent=1 // pred_check_branch
      %1103 = sbr.rel (0) target = $region41
    $region40: #{sonianet_forward.1} parent=1 // pred_region
      %1105 = vsyncadd [#allocation3], 0
      %s1107 = sshll.u32 [#allocation2], 4
      %s1108 = int_to_ptr.vmem [resolvable:$true] %s1107
      %s1109 = sshll.u32 %s9, 4
      %s1110 = int_to_ptr.hbm [resolvable:$true] %s1109
      %1112 = dma.vmem_to_hbm [thread:$0]  %s1108, 16, %s1110, [#allocation3]
    $region41: #{sonianet_forward.1} parent=1 // pred_fallthru
      _
    // Predicated region
    $region42: #{sonianet_forward.1} parent=1 // pred_check
      _
    $region43: #{sonianet_forward.1} parent=1 // pred_check_branch
      %1114 = sbr.rel (0) target = $region45
    $region44: #{sonianet_forward.1} parent=1 // pred_region
      %1116 = dma.done [#allocation3], 16
    $region45: #{sonianet_forward.1} parent=1 // pred_fallthru
      _
    %1117 = vsyncpa [#allocation3], 1

</llo_original>
